<compile_context>
chip_gen: v5e
topology: v5e:2x2
jax: 0.10.0
libtpu: 0.0.40
codegen_flags: <defaults>
</compile_context>

<pallas_src>
import functools

import jax
import jax.numpy as jnp
from jax.experimental import pallas as pl
from jax.experimental.pallas import tpu as pltpu

# TODO(synk): CBOW / CNN-subword embedding branches and dropout>0 are not exercised
# (module defaults disable them); only the base forward path is implemented.


def _round_up(x: int, m: int) -> int:
    return (x + m - 1) // m * m


def tagger_kernel(idx_ref, table_ref, w1_ref, b1_ref, w2_ref, b2_ref, out_ref,
                  *, approx_recip: bool):
    """Fused forward: gather -> linear1 -> tanh -> linear2 -> softmax.

    idx_ref  : (TB, W)      int32  word indices for this batch tile (streamed)
    table_ref: (Vp, Ep)     f32    zero-padded embedding table (VMEM resident)
    w1_ref   : (W, Ep, Hp)  f32    linear1 weight reshaped per window position
    b1_ref   : (1, Hp)      f32
    w2_ref   : (Hp, Lp)     f32
    b2_ref   : (1, Lp)      f32    padded label lanes hold -1e30 -> softmax == 0
    out_ref  : (TB, Lp)     f32    lane-dense softmax probabilities
    """
    idx = idx_ref[...]                                   # (TB, W) int32
    tb, window = idx.shape
    vp = table_ref.shape[0]
    hp = w1_ref.shape[2]

    table = table_ref[...]                               # (Vp, Ep), loaded once
    lane_iota = jax.lax.broadcasted_iota(jnp.int32, (tb, vp), 1)

    # linear_layer_1 fused with the embedding gather, decomposed per window slot:
    #   Z1 = b1 + sum_w onehot(x[:, w]) @ table @ W1[w]
    acc = jnp.zeros((tb, hp), jnp.float32)
    for w in range(window):                              # static unroll (window=5)
        onehot = (lane_iota == idx[:, w:w + 1]).astype(jnp.float32)          # (TB, Vp)
        emb_w = jnp.dot(onehot, table, preferred_element_type=jnp.float32)   # (TB, Ep)
        acc = acc + jnp.dot(emb_w, w1_ref[w], preferred_element_type=jnp.float32)
    z1 = acc + b1_ref[...]

    a1 = jnp.tanh(z1)                                    # dropout(p=0) == identity
    z2 = jnp.dot(a1, w2_ref[...], preferred_element_type=jnp.float32) + b2_ref[...]

    # softmax over the lane-dense (padded) label axis; padded lanes contribute 0.
    z2 = z2 - jnp.max(z2, axis=-1, keepdims=True)
    e = jnp.exp(z2)
    denom = jnp.sum(e, axis=-1, keepdims=True)
    out_ref[...] = e * pl.reciprocal(denom, approx=approx_recip)


def tagger_forward(x_idx, emb_table, w1, b1, w2, b2, *, approx_recip=True,
                   batch_tile=512):
    """Full Tagger.forward.

    x_idx: (B, W) int word indices; emb_table: (V, E); w1: (W*E, H); b1: (H,);
    w2: (H, L); b2: (L,).  Returns (B, L) softmax probabilities (f32).
    """
    B, W = x_idx.shape
    V, E = emb_table.shape
    K, H = w1.shape
    L = w2.shape[1]
    assert K == W * E

    f32 = jnp.float32
    # Lane/sublane-friendly padded sizes. Zero padding is exact for this network;
    # padded label lanes get a -1e30 bias so exp() underflows to exactly 0.
    Vp = _round_up(V, 128)
    Ep = _round_up(E, 128)
    Hp = _round_up(H, 128)
    Lp = _round_up(L, 128)

    table_p = jnp.zeros((Vp, Ep), f32).at[:V, :E].set(emb_table.astype(f32))
    w1_p = jnp.zeros((W, Ep, Hp), f32).at[:, :E, :H].set(
        w1.astype(f32).reshape(W, E, H))
    b1_p = jnp.zeros((1, Hp), f32).at[0, :H].set(b1.astype(f32).reshape(H))
    w2_p = jnp.zeros((Hp, Lp), f32).at[:H, :L].set(w2.astype(f32))
    b2_p = jnp.full((1, Lp), -1e30, f32).at[0, :L].set(b2.astype(f32).reshape(L))

    # Batch tiling: largest tile that amortizes per-step overhead while keeping the
    # per-step VMEM footprint (~2 MB at TB=512) far under v7x's 64 MiB VMEM.
    TB = min(batch_tile, _round_up(B, 8))
    Bp = _round_up(B, TB)
    idx_p = jnp.zeros((Bp, W), jnp.int32).at[:B, :].set(x_idx.astype(jnp.int32))

    grid = (Bp // TB,)
    flops = 2 * Bp * (W * (Vp * Ep + Ep * Hp) + Hp * Lp)
    transcendentals = Bp * (Hp + Lp)
    bytes_accessed = 4 * (idx_p.size + table_p.size + w1_p.size + b1_p.size
                          + w2_p.size + b2_p.size + Bp * Lp)

    probs_p = pl.pallas_call(
        functools.partial(tagger_kernel, approx_recip=approx_recip),
        out_shape=jax.ShapeDtypeStruct((Bp, Lp), f32),
        grid=grid,
        in_specs=[
            pl.BlockSpec((TB, W), lambda i: (i, 0)),         # streamed indices
            pl.BlockSpec((Vp, Ep), lambda i: (0, 0)),        # resident emb table
            pl.BlockSpec((W, Ep, Hp), lambda i: (0, 0, 0)),  # resident W1
            pl.BlockSpec((1, Hp), lambda i: (0, 0)),         # resident b1
            pl.BlockSpec((Hp, Lp), lambda i: (0, 0)),        # resident W2
            pl.BlockSpec((1, Lp), lambda i: (0, 0)),         # resident b2
        ],
        out_specs=pl.BlockSpec((TB, Lp), lambda i: (i, 0)),  # lane-dense output
        compiler_params=pltpu.CompilerParams(
            dimension_semantics=("parallel",)),
        cost_estimate=pl.CostEstimate(
            flops=int(flops),
            transcendentals=int(transcendentals),
            bytes_accessed=int(bytes_accessed)),
    )(idx_p, table_p, w1_p, b1_p, w2_p, b2_p)

    return probs_p[:B, :L]


def reference_forward(x_idx, emb_table, w1, b1, w2, b2):
    emb = jnp.take(emb_table, x_idx, axis=0).reshape(x_idx.shape[0], -1)
    z1 = emb @ w1 + b1.reshape(1, -1)
    a1 = jnp.tanh(z1)
    z2 = a1 @ w2 + b2.reshape(1, -1)
    return jax.nn.softmax(z2, axis=1)


if __name__ == "__main__":
    # Small shapes consistent with the module's constructor semantics.
    batch_size = 8
    vocabulary_size = 250
    embedding_dim = 50
    window_size = 5
    hidden_dim = 32
    num_of_labels = 5
    fc_input_dim = window_size * embedding_dim  # 250

    key = jax.random.PRNGKey(0)
    k_emb, k_w1, k_w2, k_x = jax.random.split(key, 4)

    # Deterministic synthetic parameters mirroring the torch layer shapes
    # (Linear weights stored transposed: (in, out)).
    emb_table = jax.random.normal(k_emb, (vocabulary_size, embedding_dim), jnp.float32)
    lim1 = (1.0 / fc_input_dim) ** 0.5
    w1 = jax.random.uniform(k_w1, (fc_input_dim, hidden_dim), jnp.float32, -lim1, lim1)
    b1 = jnp.zeros((hidden_dim,), jnp.float32)
    lim2 = (1.0 / hidden_dim) ** 0.5
    w2 = jax.random.uniform(k_w2, (hidden_dim, num_of_labels), jnp.float32, -lim2, lim2)
    b2 = jnp.zeros((num_of_labels,), jnp.float32)

    # Input: window of word indices per example.
    x = jax.random.randint(k_x, (batch_size, window_size), 0, vocabulary_size, jnp.int32)

    ref = reference_forward(x, emb_table, w1, b1, w2, b2)

    # Exact-reciprocal path: f32 parity with the reference at 1e-5.
    probs_exact = jax.block_until_ready(
        tagger_forward(x, emb_table, w1, b1, w2, b2, approx_recip=False))
    assert probs_exact.shape == (batch_size, num_of_labels)
    assert jnp.allclose(probs_exact, ref, atol=1e-5, rtol=1e-5)
    assert jnp.allclose(jnp.sum(probs_exact, axis=1), 1.0, atol=1e-5)

    # Fast path: EUP approximate reciprocal for the softmax denominator.
    probs_fast = jax.block_until_ready(
        tagger_forward(x, emb_table, w1, b1, w2, b2, approx_recip=True))
    assert probs_fast.shape == (batch_size, num_of_labels)
    assert jnp.allclose(probs_fast, ref, atol=2e-3, rtol=2e-3)
    assert bool(jnp.all(jnp.argmax(probs_fast, axis=1) == jnp.argmax(ref, axis=1)))

    print("KERNEL_OK")
</pallas_src>

<mosaic_0001>
module attributes {stable_mosaic.version = 11 : i64} {
  func.func @tagger_kernel(%arg0: i32, %arg1: memref<8x5xi32, #tpu.memory_space<vmem>>, %arg2: memref<256x128xf32, #tpu.memory_space<vmem>>, %arg3: memref<5x128x128xf32, #tpu.memory_space<vmem>>, %arg4: memref<1x128xf32, #tpu.memory_space<vmem>>, %arg5: memref<128x128xf32, #tpu.memory_space<vmem>>, %arg6: memref<1x128xf32, #tpu.memory_space<vmem>>, %arg7: memref<8x128xf32, #tpu.memory_space<vmem>>) attributes {dimension_semantics = [#tpu.dimension_semantics<parallel>], iteration_bounds = array<i64: 1>, scalar_prefetch = 0 : i64, scratch_operands = 0 : i64, tpu.core_type = #tpu.core_type<tc>, window_params = [{transform_indices = @transform_0, window_bounds = array<i64: 8, 5>}, {pipeline_mode = #tpu.pipeline_mode<synchronous>, transform_indices = @transform_1, window_bounds = array<i64: 256, 128>}, {pipeline_mode = #tpu.pipeline_mode<synchronous>, transform_indices = @transform_2, window_bounds = array<i64: 5, 128, 128>}, {pipeline_mode = #tpu.pipeline_mode<synchronous>, transform_indices = @transform_3, window_bounds = array<i64: 1, 128>}, {pipeline_mode = #tpu.pipeline_mode<synchronous>, transform_indices = @transform_4, window_bounds = array<i64: 128, 128>}, {pipeline_mode = #tpu.pipeline_mode<synchronous>, transform_indices = @transform_5, window_bounds = array<i64: 1, 128>}, {transform_indices = @transform_6, window_bounds = array<i64: 8, 128>}]} {
    %c0 = arith.constant 0 : index
    %c0_0 = arith.constant 0 : index
    %0 = vector.load %arg1[%c0, %c0_0] : memref<8x5xi32, #tpu.memory_space<vmem>>, vector<8x5xi32>
    %c0_1 = arith.constant 0 : index
    %c0_2 = arith.constant 0 : index
    %1 = vector.load %arg2[%c0_1, %c0_2] : memref<256x128xf32, #tpu.memory_space<vmem>>, vector<256x128xf32>
    %2 = tpu.iota {dimensions = array<i32: 1>} : vector<8x256xi32>
    %cst = arith.constant 0.000000e+00 : f32
    %3 = vector.broadcast %cst : f32 to vector<8x128xf32>
    %4 = vector.extract_strided_slice %0 {offsets = [0, 0], sizes = [8, 1], strides = [1, 1]} : vector<8x5xi32> to vector<8x1xi32>
    %5 = vector.broadcast %4 : vector<8x1xi32> to vector<8x256xi32>
    %6 = arith.cmpi eq, %2, %5 : vector<8x256xi32>
    %7 = arith.extui %6 : vector<8x256xi1> to vector<8x256xi32>
    %8 = arith.sitofp %7 : vector<8x256xi32> to vector<8x256xf32>
    %cst_3 = arith.constant dense<0.000000e+00> : vector<8x128xf32>
    %9 = tpu.matmul %8, %1, %cst_3 {dimension_numbers = #tpu.dot_dimension_numbers<[1], [0], [0], [1], [0, 0, 1, 1], [], []>} : vector<8x256xf32>, vector<256x128xf32>, vector<8x128xf32> -> vector<8x128xf32>
    %c0_4 = arith.constant 0 : index
    %c0_5 = arith.constant 0 : index
    %c0_6 = arith.constant 0 : index
    %10 = vector.load %arg3[%c0_4, %c0_5, %c0_6] : memref<5x128x128xf32, #tpu.memory_space<vmem>>, vector<1x128x128xf32>
    %11 = vector.shape_cast %10 : vector<1x128x128xf32> to vector<128x128xf32>
    %cst_7 = arith.constant dense<0.000000e+00> : vector<8x128xf32>
    %12 = tpu.matmul %9, %11, %cst_7 {dimension_numbers = #tpu.dot_dimension_numbers<[1], [0], [0], [1], [0, 0, 1, 1], [], []>} : vector<8x128xf32>, vector<128x128xf32>, vector<8x128xf32> -> vector<8x128xf32>
    %13 = arith.addf %3, %12 : vector<8x128xf32>
    %14 = vector.extract_strided_slice %0 {offsets = [0, 1], sizes = [8, 1], strides = [1, 1]} : vector<8x5xi32> to vector<8x1xi32>
    %15 = vector.broadcast %14 : vector<8x1xi32> to vector<8x256xi32>
    %16 = arith.cmpi eq, %2, %15 : vector<8x256xi32>
    %17 = arith.extui %16 : vector<8x256xi1> to vector<8x256xi32>
    %18 = arith.sitofp %17 : vector<8x256xi32> to vector<8x256xf32>
    %cst_8 = arith.constant dense<0.000000e+00> : vector<8x128xf32>
    %19 = tpu.matmul %18, %1, %cst_8 {dimension_numbers = #tpu.dot_dimension_numbers<[1], [0], [0], [1], [0, 0, 1, 1], [], []>} : vector<8x256xf32>, vector<256x128xf32>, vector<8x128xf32> -> vector<8x128xf32>
    %c1 = arith.constant 1 : index
    %c0_9 = arith.constant 0 : index
    %c0_10 = arith.constant 0 : index
    %20 = vector.load %arg3[%c1, %c0_9, %c0_10] : memref<5x128x128xf32, #tpu.memory_space<vmem>>, vector<1x128x128xf32>
    %21 = vector.shape_cast %20 : vector<1x128x128xf32> to vector<128x128xf32>
    %cst_11 = arith.constant dense<0.000000e+00> : vector<8x128xf32>
    %22 = tpu.matmul %19, %21, %cst_11 {dimension_numbers = #tpu.dot_dimension_numbers<[1], [0], [0], [1], [0, 0, 1, 1], [], []>} : vector<8x128xf32>, vector<128x128xf32>, vector<8x128xf32> -> vector<8x128xf32>
    %23 = arith.addf %13, %22 : vector<8x128xf32>
    %24 = vector.extract_strided_slice %0 {offsets = [0, 2], sizes = [8, 1], strides = [1, 1]} : vector<8x5xi32> to vector<8x1xi32>
    %25 = vector.broadcast %24 : vector<8x1xi32> to vector<8x256xi32>
    %26 = arith.cmpi eq, %2, %25 : vector<8x256xi32>
    %27 = arith.extui %26 : vector<8x256xi1> to vector<8x256xi32>
    %28 = arith.sitofp %27 : vector<8x256xi32> to vector<8x256xf32>
    %cst_12 = arith.constant dense<0.000000e+00> : vector<8x128xf32>
    %29 = tpu.matmul %28, %1, %cst_12 {dimension_numbers = #tpu.dot_dimension_numbers<[1], [0], [0], [1], [0, 0, 1, 1], [], []>} : vector<8x256xf32>, vector<256x128xf32>, vector<8x128xf32> -> vector<8x128xf32>
    %c2 = arith.constant 2 : index
    %c0_13 = arith.constant 0 : index
    %c0_14 = arith.constant 0 : index
    %30 = vector.load %arg3[%c2, %c0_13, %c0_14] : memref<5x128x128xf32, #tpu.memory_space<vmem>>, vector<1x128x128xf32>
    %31 = vector.shape_cast %30 : vector<1x128x128xf32> to vector<128x128xf32>
    %cst_15 = arith.constant dense<0.000000e+00> : vector<8x128xf32>
    %32 = tpu.matmul %29, %31, %cst_15 {dimension_numbers = #tpu.dot_dimension_numbers<[1], [0], [0], [1], [0, 0, 1, 1], [], []>} : vector<8x128xf32>, vector<128x128xf32>, vector<8x128xf32> -> vector<8x128xf32>
    %33 = arith.addf %23, %32 : vector<8x128xf32>
    %34 = vector.extract_strided_slice %0 {offsets = [0, 3], sizes = [8, 1], strides = [1, 1]} : vector<8x5xi32> to vector<8x1xi32>
    %35 = vector.broadcast %34 : vector<8x1xi32> to vector<8x256xi32>
    %36 = arith.cmpi eq, %2, %35 : vector<8x256xi32>
    %37 = arith.extui %36 : vector<8x256xi1> to vector<8x256xi32>
    %38 = arith.sitofp %37 : vector<8x256xi32> to vector<8x256xf32>
    %cst_16 = arith.constant dense<0.000000e+00> : vector<8x128xf32>
    %39 = tpu.matmul %38, %1, %cst_16 {dimension_numbers = #tpu.dot_dimension_numbers<[1], [0], [0], [1], [0, 0, 1, 1], [], []>} : vector<8x256xf32>, vector<256x128xf32>, vector<8x128xf32> -> vector<8x128xf32>
    %c3 = arith.constant 3 : index
    %c0_17 = arith.constant 0 : index
    %c0_18 = arith.constant 0 : index
    %40 = vector.load %arg3[%c3, %c0_17, %c0_18] : memref<5x128x128xf32, #tpu.memory_space<vmem>>, vector<1x128x128xf32>
    %41 = vector.shape_cast %40 : vector<1x128x128xf32> to vector<128x128xf32>
    %cst_19 = arith.constant dense<0.000000e+00> : vector<8x128xf32>
    %42 = tpu.matmul %39, %41, %cst_19 {dimension_numbers = #tpu.dot_dimension_numbers<[1], [0], [0], [1], [0, 0, 1, 1], [], []>} : vector<8x128xf32>, vector<128x128xf32>, vector<8x128xf32> -> vector<8x128xf32>
    %43 = arith.addf %33, %42 : vector<8x128xf32>
    %44 = vector.extract_strided_slice %0 {offsets = [0, 4], sizes = [8, 1], strides = [1, 1]} : vector<8x5xi32> to vector<8x1xi32>
    %45 = vector.broadcast %44 : vector<8x1xi32> to vector<8x256xi32>
    %46 = arith.cmpi eq, %2, %45 : vector<8x256xi32>
    %47 = arith.extui %46 : vector<8x256xi1> to vector<8x256xi32>
    %48 = arith.sitofp %47 : vector<8x256xi32> to vector<8x256xf32>
    %cst_20 = arith.constant dense<0.000000e+00> : vector<8x128xf32>
    %49 = tpu.matmul %48, %1, %cst_20 {dimension_numbers = #tpu.dot_dimension_numbers<[1], [0], [0], [1], [0, 0, 1, 1], [], []>} : vector<8x256xf32>, vector<256x128xf32>, vector<8x128xf32> -> vector<8x128xf32>
    %c4 = arith.constant 4 : index
    %c0_21 = arith.constant 0 : index
    %c0_22 = arith.constant 0 : index
    %50 = vector.load %arg3[%c4, %c0_21, %c0_22] : memref<5x128x128xf32, #tpu.memory_space<vmem>>, vector<1x128x128xf32>
    %51 = vector.shape_cast %50 : vector<1x128x128xf32> to vector<128x128xf32>
    %cst_23 = arith.constant dense<0.000000e+00> : vector<8x128xf32>
    %52 = tpu.matmul %49, %51, %cst_23 {dimension_numbers = #tpu.dot_dimension_numbers<[1], [0], [0], [1], [0, 0, 1, 1], [], []>} : vector<8x128xf32>, vector<128x128xf32>, vector<8x128xf32> -> vector<8x128xf32>
    %53 = arith.addf %43, %52 : vector<8x128xf32>
    %c0_24 = arith.constant 0 : index
    %c0_25 = arith.constant 0 : index
    %54 = vector.load %arg4[%c0_24, %c0_25] : memref<1x128xf32, #tpu.memory_space<vmem>>, vector<1x128xf32>
    %55 = vector.broadcast %54 : vector<1x128xf32> to vector<8x128xf32>
    %56 = arith.addf %53, %55 : vector<8x128xf32>
    %57 = math.tanh %56 : vector<8x128xf32>
    %c0_26 = arith.constant 0 : index
    %c0_27 = arith.constant 0 : index
    %58 = vector.load %arg5[%c0_26, %c0_27] : memref<128x128xf32, #tpu.memory_space<vmem>>, vector<128x128xf32>
    %cst_28 = arith.constant dense<0.000000e+00> : vector<8x128xf32>
    %59 = tpu.matmul %57, %58, %cst_28 {dimension_numbers = #tpu.dot_dimension_numbers<[1], [0], [0], [1], [0, 0, 1, 1], [], []>} : vector<8x128xf32>, vector<128x128xf32>, vector<8x128xf32> -> vector<8x128xf32>
    %c0_29 = arith.constant 0 : index
    %c0_30 = arith.constant 0 : index
    %60 = vector.load %arg6[%c0_29, %c0_30] : memref<1x128xf32, #tpu.memory_space<vmem>>, vector<1x128xf32>
    %61 = vector.broadcast %60 : vector<1x128xf32> to vector<8x128xf32>
    %62 = arith.addf %59, %61 : vector<8x128xf32>
    %cst_31 = arith.constant dense<0xFF800000> : vector<8xf32>
    %63 = vector.multi_reduction <maximumf>, %62, %cst_31 [1] : vector<8x128xf32> to vector<8xf32>
    %64 = vector.shape_cast %63 : vector<8xf32> to vector<8x1xf32>
    %65 = vector.broadcast %64 : vector<8x1xf32> to vector<8x128xf32>
    %66 = arith.subf %62, %65 : vector<8x128xf32>
    %67 = math.exp %66 : vector<8x128xf32>
    %cst_32 = arith.constant dense<0.000000e+00> : vector<8xf32>
    %68 = vector.multi_reduction <add>, %67, %cst_32 [1] : vector<8x128xf32> to vector<8xf32>
    %69 = vector.shape_cast %68 : vector<8xf32> to vector<8x1xf32>
    %70 = tpu.reciprocal %69 : vector<8x1xf32> -> vector<8x1xf32>
    %71 = vector.broadcast %70 : vector<8x1xf32> to vector<8x128xf32>
    %72 = arith.mulf %67, %71 : vector<8x128xf32>
    %c0_33 = arith.constant 0 : index
    %c0_34 = arith.constant 0 : index
    %73 = vector.load %arg7[%c0_33, %c0_34] : memref<8x128xf32, #tpu.memory_space<vmem>>, vector<8x128xf32>
    tpu.vector_store %arg7[%c0_33, %c0_34], %72 {strides = array<i32>} : memref<8x128xf32, #tpu.memory_space<vmem>>, vector<8x128xf32>,
    return
  }
  func.func @transform_0(%arg0: i32) -> (i32, i32) {
    %c0_i32 = arith.constant 0 : i32
    %c0_i32_0 = arith.constant 0 : i32
    return %arg0, %c0_i32 : i32, i32
  }
  func.func @transform_1(%arg0: i32) -> (i32, i32) {
    %c0_i32 = arith.constant 0 : i32
    %c0_i32_0 = arith.constant 0 : i32
    %c0_i32_1 = arith.constant 0 : i32
    return %c0_i32, %c0_i32_0 : i32, i32
  }
  func.func @transform_2(%arg0: i32) -> (i32, i32, i32) {
    %c0_i32 = arith.constant 0 : i32
    %c0_i32_0 = arith.constant 0 : i32
    %c0_i32_1 = arith.constant 0 : i32
    %c0_i32_2 = arith.constant 0 : i32
    return %c0_i32, %c0_i32_0, %c0_i32_1 : i32, i32, i32
  }
  func.func @transform_3(%arg0: i32) -> (i32, i32) {
    %c0_i32 = arith.constant 0 : i32
    %c0_i32_0 = arith.constant 0 : i32
    %c0_i32_1 = arith.constant 0 : i32
    return %c0_i32, %c0_i32_0 : i32, i32
  }
  func.func @transform_4(%arg0: i32) -> (i32, i32) {
    %c0_i32 = arith.constant 0 : i32
    %c0_i32_0 = arith.constant 0 : i32
    %c0_i32_1 = arith.constant 0 : i32
    return %c0_i32, %c0_i32_0 : i32, i32
  }
  func.func @transform_5(%arg0: i32) -> (i32, i32) {
    %c0_i32 = arith.constant 0 : i32
    %c0_i32_0 = arith.constant 0 : i32
    %c0_i32_1 = arith.constant 0 : i32
    return %c0_i32, %c0_i32_0 : i32, i32
  }
  func.func @transform_6(%arg0: i32) -> (i32, i32) {
    %c0_i32 = arith.constant 0 : i32
    %c0_i32_0 = arith.constant 0 : i32
    return %arg0, %c0_i32 : i32, i32
  }
}

</mosaic_0001>

<llo_original>
// kernel: tpu_custom_call.1
$region0: #{tpu_custom_call.1}
  #allocation0 [shape = 'u32[]', space=smem, size = 0x4, offset = 0x4, fixed_abs, tag = 'smem constant byte address 0x4 - core index']
  #allocation1 [shape = 'u32[72,128]{1,0:T(1,128)}', space=vmem, size = 0x9000, scoped, tag = 'internal scratch']
  %s0 = inlined_call_operand.hbm [shape: s32[8,5], index: 0, kind: input, shape index: {}]
  %s1 = inlined_call_operand.hbm [shape: f32[256,128], index: 1, kind: input, shape index: {}]
  %s2 = inlined_call_operand.hbm [shape: f32[5,128,128], index: 2, kind: input, shape index: {}]
  %s3 = inlined_call_operand.vmem [shape: f32[1,128], index: 3, kind: input, shape index: {}]
  %s4 = inlined_call_operand.hbm [shape: f32[128,128], index: 4, kind: input, shape index: {}]
  %s5 = inlined_call_operand.vmem [shape: f32[1,128], index: 5, kind: input, shape index: {}]
  %s6 = inlined_call_operand.hbm [shape: f32[8,128], index: 6, kind: output, shape index: {}]
  %s7 = sld [smem:[#allocation0]]
  $region50: #{tpu_custom_call.1} parent=0
    _
  %s9 = ssub.s32 1, %s7
  %s10 = scalar_select 0, %s9, %s7
  $region1: #{tpu_custom_call.1} parent=0
    #allocation2 [shape = 'u8[4096]{0}', space=vmem, size = 0x1000, scoped, tag = 'input window, operand 0, single buffered']
    #allocation3 [shape = 's32[1]{0}', space=sflag, size = 0x4, scoped, tag = 'scoped memory for tpu_custom_call.1']
    #allocation4 [shape = 's32[1]{0}', space=sflag, size = 0x4, scoped, tag = 'scoped memory for tpu_custom_call.1']
    #allocation5 [shape = 'u8[131072]{0}', space=vmem, size = 0x20000, scoped, tag = 'input window, operand 1, single buffered']
    #allocation6 [shape = 's32[1]{0}', space=sflag, size = 0x4, scoped, tag = 'scoped memory for tpu_custom_call.1']
    #allocation7 [shape = 'u8[327680]{0}', space=vmem, size = 0x50000, scoped, tag = 'input window, operand 2, single buffered']
    #allocation8 [shape = 'u8[65536]{0}', space=vmem, size = 0x10000, scoped, tag = 'input window, operand 4, single buffered']
    #allocation9 [shape = 's32[1]{0}', space=sflag, size = 0x4, scoped, tag = 'scoped memory for tpu_custom_call.1']
    #allocation10 [shape = 'u8[4096]{0}', space=vmem, size = 0x1000, scoped, tag = 'output window, operand 0, single buffered']
    %11 = vsyncpa [#allocation3], 0
    %12 = vsyncpa [#allocation6], 0
    %13 = vsyncpa [#allocation9], 0
    %14 = vsyncpa [#allocation4], 0
    // Predicated region
    $region2: #{tpu_custom_call.1} parent=1 // pred_check
      _
    $region3: #{tpu_custom_call.1} parent=1 // pred_check_branch
      %16 = sbr.rel (0) target = $region5
    $region4: #{tpu_custom_call.1} parent=1 // pred_region
      %18 = vsyncadd [#allocation3], 0
      %s20 = sshll.u32 %s0, 4
      %s21 = int_to_ptr.hbm [resolvable:$true] %s20
      %s22 = sshll.u32 [#allocation2], 4
      %s23 = int_to_ptr.vmem [resolvable:$true] %s22
      %25 = dma.hbm_to_vmem [thread:$0]  %s21, 128, %s23, [#allocation3]
    $region5: #{tpu_custom_call.1} parent=1 // pred_fallthru
      _
    // Predicated region
    $region6: #{tpu_custom_call.1} parent=1 // pred_check
      _
    $region7: #{tpu_custom_call.1} parent=1 // pred_check_branch
      %27 = sbr.rel (0) target = $region9
    $region8: #{tpu_custom_call.1} parent=1 // pred_region
      %29 = vsyncadd [#allocation6], 0
      %s30 = sshll.u32 %s1, 4
      %s31 = int_to_ptr.hbm [resolvable:$true] %s30
      %s32 = sshll.u32 [#allocation5], 4
      %s33 = int_to_ptr.vmem [resolvable:$true] %s32
      %38 = dma.hbm_to_vmem [thread:$0]  %s31, 4096, %s33, [#allocation6], 128, 128, 8
    $region9: #{tpu_custom_call.1} parent=1 // pred_fallthru
      _
    // Predicated region
    $region10: #{tpu_custom_call.1} parent=1 // pred_check
      _
    $region11: #{tpu_custom_call.1} parent=1 // pred_check_branch
      %40 = sbr.rel (0) target = $region13
    $region12: #{tpu_custom_call.1} parent=1 // pred_region
      %42 = vsyncadd [#allocation6], 0
      %s43 = sshll.u32 %s2, 4
      %s44 = int_to_ptr.hbm [resolvable:$true] %s43
      %s45 = sshll.u32 [#allocation7], 4
      %s46 = int_to_ptr.vmem [resolvable:$true] %s45
      %51 = dma.hbm_to_vmem [thread:$0]  %s44, 10240, %s46, [#allocation6], 128, 128, 8
    $region13: #{tpu_custom_call.1} parent=1 // pred_fallthru
      _
    // Predicated region
    $region14: #{tpu_custom_call.1} parent=1 // pred_check
      _
    $region15: #{tpu_custom_call.1} parent=1 // pred_check_branch
      %53 = sbr.rel (0) target = $region17
    $region16: #{tpu_custom_call.1} parent=1 // pred_region
      _
    $region17: #{tpu_custom_call.1} parent=1 // pred_fallthru
      _
    // Predicated region
    $region18: #{tpu_custom_call.1} parent=1 // pred_check
      _
    $region19: #{tpu_custom_call.1} parent=1 // pred_check_branch
      %55 = sbr.rel (0) target = $region21
    $region20: #{tpu_custom_call.1} parent=1 // pred_region
      %57 = vsyncadd [#allocation9], 0
      %s58 = sshll.u32 %s4, 4
      %s59 = int_to_ptr.hbm [resolvable:$true] %s58
      %s60 = sshll.u32 [#allocation8], 4
      %s61 = int_to_ptr.vmem [resolvable:$true] %s60
      %66 = dma.hbm_to_vmem [thread:$0]  %s59, 2048, %s61, [#allocation9], 128, 128, 8
    $region21: #{tpu_custom_call.1} parent=1 // pred_fallthru
      _
    // Predicated region
    $region22: #{tpu_custom_call.1} parent=1 // pred_check
      _
    $region23: #{tpu_custom_call.1} parent=1 // pred_check_branch
      %68 = sbr.rel (0) target = $region25
    $region24: #{tpu_custom_call.1} parent=1 // pred_region
      _
    $region25: #{tpu_custom_call.1} parent=1 // pred_fallthru
      _
    // Predicated region
    $region26: #{tpu_custom_call.1} parent=1 // pred_check
      _
    $region27: #{tpu_custom_call.1} parent=1 // pred_check_branch
      %70 = sbr.rel (0) target = $region29
    $region28: #{tpu_custom_call.1} parent=1 // pred_region
      %72 = dma.done [#allocation3], 128
    $region29: #{tpu_custom_call.1} parent=1 // pred_fallthru
      _
    // Predicated region
    $region30: #{tpu_custom_call.1} parent=1 // pred_check
      _
    $region31: #{tpu_custom_call.1} parent=1 // pred_check_branch
      %74 = sbr.rel (0) target = $region33
    $region32: #{tpu_custom_call.1} parent=1 // pred_region
      %76 = dma.done [#allocation6], 4096
    $region33: #{tpu_custom_call.1} parent=1 // pred_fallthru
      _
    // Predicated region
    $region34: #{tpu_custom_call.1} parent=1 // pred_check
      _
    $region35: #{tpu_custom_call.1} parent=1 // pred_check_branch
      %78 = sbr.rel (0) target = $region37
    $region36: #{tpu_custom_call.1} parent=1 // pred_region
      %80 = dma.done [#allocation6], 10240
    $region37: #{tpu_custom_call.1} parent=1 // pred_fallthru
      _
    // Predicated region
    $region38: #{tpu_custom_call.1} parent=1 // pred_check
      _
    $region39: #{tpu_custom_call.1} parent=1 // pred_check_branch
      %82 = sbr.rel (0) target = $region41
    $region40: #{tpu_custom_call.1} parent=1 // pred_region
      %84 = dma.done [#allocation9], 2048
    $region41: #{tpu_custom_call.1} parent=1 // pred_fallthru
      _
    %v85 = vld [vmem:[#allocation2] sm:$0xff]
    %v86 = vld [vmem:[#allocation5] sm:$0xff]
    %v87 = vld [vmem:[#allocation5 + $0x8] sm:$0xff]
    %v88 = vld [vmem:[#allocation5 + $0x10] sm:$0xff]
    %v89 = vld [vmem:[#allocation5 + $0x18] sm:$0xff]
    %v90 = vld [vmem:[#allocation5 + $0x20] sm:$0xff]
    %v91 = vld [vmem:[#allocation5 + $0x28] sm:$0xff]
    %v92 = vld [vmem:[#allocation5 + $0x30] sm:$0xff]
    %v93 = vld [vmem:[#allocation5 + $0x38] sm:$0xff]
    %v94 = vld [vmem:[#allocation5 + $0x40] sm:$0xff]
    %v95 = vld [vmem:[#allocation5 + $0x48] sm:$0xff]
    %v96 = vld [vmem:[#allocation5 + $0x50] sm:$0xff]
    %v97 = vld [vmem:[#allocation5 + $0x58] sm:$0xff]
    %v98 = vld [vmem:[#allocation5 + $0x60] sm:$0xff]
    %v99 = vld [vmem:[#allocation5 + $0x68] sm:$0xff]
    %v100 = vld [vmem:[#allocation5 + $0x70] sm:$0xff]
    %v101 = vld [vmem:[#allocation5 + $0x78] sm:$0xff]
    %v102 = vld [vmem:[#allocation5 + $0x80] sm:$0xff]
    %v103 = vld [vmem:[#allocation5 + $0x88] sm:$0xff]
    %v104 = vld [vmem:[#allocation5 + $0x90] sm:$0xff]
    %v105 = vld [vmem:[#allocation5 + $0x98] sm:$0xff]
    %v106 = vld [vmem:[#allocation5 + $0xa0] sm:$0xff]
    %v107 = vld [vmem:[#allocation5 + $0xa8] sm:$0xff]
    %v108 = vld [vmem:[#allocation5 + $0xb0] sm:$0xff]
    %v109 = vld [vmem:[#allocation5 + $0xb8] sm:$0xff]
    %v110 = vld [vmem:[#allocation5 + $0xc0] sm:$0xff]
    %v111 = vld [vmem:[#allocation5 + $0xc8] sm:$0xff]
    %v112 = vld [vmem:[#allocation5 + $0xd0] sm:$0xff]
    %v113 = vld [vmem:[#allocation5 + $0xd8] sm:$0xff]
    %v114 = vld [vmem:[#allocation5 + $0xe0] sm:$0xff]
    %v115 = vld [vmem:[#allocation5 + $0xe8] sm:$0xff]
    %v116 = vld [vmem:[#allocation5 + $0xf0] sm:$0xff]
    %v117 = vld [vmem:[#allocation5 + $0xf8] sm:$0xff]
    %v118 = vlaneseq
    %v119 = vand.u32 %v118, 127
    %v120 = vadd.s32 %v119, 128
    %121 = vset.pattern.permute.xlu0 0
    %122 = vperm.xlu0 %121, %v85
    %v123 = vpop.permute.xlu0 %122
    %vm124 = vcmp.eq.s32.totalorder %v119, %v123
    %vm125 = vcmp.eq.s32.totalorder %v120, %v123
    %v126 = vsel %vm124, 1, 0
    %v127 = vsel %vm125, 1, 0
    %v128 = vcvt.s32.f32 %v126
    %v129 = vcvt.s32.f32 %v127
    %130 = vmatpush.msra.mxu0 %v101
    %131 = vmatpush.msra.mxu0 %v100
    %132 = vmatpush.msra.mxu0 %v99
    %133 = vmatpush.msra.mxu0 %v98
    %134 = vmatpush.msra.mxu0 %v97
    %135 = vmatpush.msra.mxu0 %v96
    %136 = vmatpush.msra.mxu0 %v95
    %137 = vmatpush.msra.mxu0 %v94
    %138 = vmatpush.msra.mxu0 %v93
    %139 = vmatpush.msra.mxu0 %v92
    %140 = vmatpush.msra.mxu0 %v91
    %141 = vmatpush.msra.mxu0 %v90
    %142 = vmatpush.msra.mxu0 %v89
    %143 = vmatpush.msra.mxu0 %v88
    %144 = vmatpush.msra.mxu0 %v87
    %145 = vmatpush.msra.mxu0 %v86
    %146 = vmatmul.f32.gmra.mxu0 %v128
    %v147 = vpop.f32.mrf.mxu0
    %v148 = vadd.f32 0.0, %v147
    %149 = vdwg.mxu0
    %150 = vmatpush.msra.mxu0 %v117
    %151 = vmatpush.msra.mxu0 %v116
    %152 = vmatpush.msra.mxu0 %v115
    %153 = vmatpush.msra.mxu0 %v114
    %154 = vmatpush.msra.mxu0 %v113
    %155 = vmatpush.msra.mxu0 %v112
    %156 = vmatpush.msra.mxu0 %v111
    %157 = vmatpush.msra.mxu0 %v110
    %158 = vmatpush.msra.mxu0 %v109
    %159 = vmatpush.msra.mxu0 %v108
    %160 = vmatpush.msra.mxu0 %v107
    %161 = vmatpush.msra.mxu0 %v106
    %162 = vmatpush.msra.mxu0 %v105
    %163 = vmatpush.msra.mxu0 %v104
    %164 = vmatpush.msra.mxu0 %v103
    %165 = vmatpush.msra.mxu0 %v102
    %166 = vmatmul.f32.gmra.mxu0 %v129
    %v167 = vpop.f32.mrf.mxu0
    %v168 = vadd.f32 %v148, %v167
    %169 = vdwg.mxu0
    %v170 = vld [vmem:[#allocation7] sm:$0xff]
    %v171 = vld [vmem:[#allocation7 + $0x8] sm:$0xff]
    %v172 = vld [vmem:[#allocation7 + $0x10] sm:$0xff]
    %v173 = vld [vmem:[#allocation7 + $0x18] sm:$0xff]
    %v174 = vld [vmem:[#allocation7 + $0x20] sm:$0xff]
    %v175 = vld [vmem:[#allocation7 + $0x28] sm:$0xff]
    %v176 = vld [vmem:[#allocation7 + $0x30] sm:$0xff]
    %v177 = vld [vmem:[#allocation7 + $0x38] sm:$0xff]
    %v178 = vld [vmem:[#allocation7 + $0x40] sm:$0xff]
    %v179 = vld [vmem:[#allocation7 + $0x48] sm:$0xff]
    %v180 = vld [vmem:[#allocation7 + $0x50] sm:$0xff]
    %v181 = vld [vmem:[#allocation7 + $0x58] sm:$0xff]
    %v182 = vld [vmem:[#allocation7 + $0x60] sm:$0xff]
    %v183 = vld [vmem:[#allocation7 + $0x68] sm:$0xff]
    %v184 = vld [vmem:[#allocation7 + $0x70] sm:$0xff]
    %v185 = vld [vmem:[#allocation7 + $0x78] sm:$0xff]
    %186 = vset.pattern.permute.xlu0 1
    %187 = vperm.xlu0 %186, %v85
    %v188 = vpop.permute.xlu0 %187
    %vm189 = vcmp.eq.s32.totalorder %v119, %v188
    %vm190 = vcmp.eq.s32.totalorder %v120, %v188
    %v191 = vsel %vm189, 1, 0
    %v192 = vsel %vm190, 1, 0
    %v193 = vcvt.s32.f32 %v191
    %v194 = vcvt.s32.f32 %v192
    %195 = vmatpush.msra.mxu0 %v101
    %196 = vmatpush.msra.mxu0 %v100
    %197 = vmatpush.msra.mxu0 %v99
    %198 = vmatpush.msra.mxu0 %v98
    %199 = vmatpush.msra.mxu0 %v97
    %200 = vmatpush.msra.mxu0 %v96
    %201 = vmatpush.msra.mxu0 %v95
    %202 = vmatpush.msra.mxu0 %v94
    %203 = vmatpush.msra.mxu0 %v93
    %204 = vmatpush.msra.mxu0 %v92
    %205 = vmatpush.msra.mxu0 %v91
    %206 = vmatpush.msra.mxu0 %v90
    %207 = vmatpush.msra.mxu0 %v89
    %208 = vmatpush.msra.mxu0 %v88
    %209 = vmatpush.msra.mxu0 %v87
    %210 = vmatpush.msra.mxu0 %v86
    %211 = vmatmul.f32.gmra.mxu0 %v193
    %v212 = vpop.f32.mrf.mxu0
    %v213 = vadd.f32 0.0, %v212
    %214 = vdwg.mxu0
    %215 = vmatpush.msra.mxu0 %v117
    %216 = vmatpush.msra.mxu0 %v116
    %217 = vmatpush.msra.mxu0 %v115
    %218 = vmatpush.msra.mxu0 %v114
    %219 = vmatpush.msra.mxu0 %v113
    %220 = vmatpush.msra.mxu0 %v112
    %221 = vmatpush.msra.mxu0 %v111
    %222 = vmatpush.msra.mxu0 %v110
    %223 = vmatpush.msra.mxu0 %v109
    %224 = vmatpush.msra.mxu0 %v108
    %225 = vmatpush.msra.mxu0 %v107
    %226 = vmatpush.msra.mxu0 %v106
    %227 = vmatpush.msra.mxu0 %v105
    %228 = vmatpush.msra.mxu0 %v104
    %229 = vmatpush.msra.mxu0 %v103
    %230 = vmatpush.msra.mxu0 %v102
    %231 = vmatmul.f32.gmra.mxu0 %v194
    %v232 = vpop.f32.mrf.mxu0
    %v233 = vadd.f32 %v213, %v232
    %234 = vdwg.mxu0
    %s235 = scalar_lea.vmem [#allocation7], 128
    %v236 = vld [vmem:[%s235] sm:$0xff]
    %v237 = vld [vmem:[%s235 + $0x8] sm:$0xff]
    %v238 = vld [vmem:[%s235 + $0x10] sm:$0xff]
    %v239 = vld [vmem:[%s235 + $0x18] sm:$0xff]
    %v240 = vld [vmem:[%s235 + $0x20] sm:$0xff]
    %v241 = vld [vmem:[%s235 + $0x28] sm:$0xff]
    %v242 = vld [vmem:[%s235 + $0x30] sm:$0xff]
    %v243 = vld [vmem:[%s235 + $0x38] sm:$0xff]
    %v244 = vld [vmem:[%s235 + $0x40] sm:$0xff]
    %v245 = vld [vmem:[%s235 + $0x48] sm:$0xff]
    %v246 = vld [vmem:[%s235 + $0x50] sm:$0xff]
    %v247 = vld [vmem:[%s235 + $0x58] sm:$0xff]
    %v248 = vld [vmem:[%s235 + $0x60] sm:$0xff]
    %v249 = vld [vmem:[%s235 + $0x68] sm:$0xff]
    %v250 = vld [vmem:[%s235 + $0x70] sm:$0xff]
    %v251 = vld [vmem:[%s235 + $0x78] sm:$0xff]
    %252 = vmatpush.msra.mxu0 %v251
    %253 = vmatpush.msra.mxu0 %v250
    %254 = vmatpush.msra.mxu0 %v249
    %255 = vmatpush.msra.mxu0 %v248
    %256 = vmatpush.msra.mxu0 %v247
    %257 = vmatpush.msra.mxu0 %v246
    %258 = vmatpush.msra.mxu0 %v245
    %259 = vmatpush.msra.mxu0 %v244
    %260 = vmatpush.msra.mxu0 %v243
    %261 = vmatpush.msra.mxu0 %v242
    %262 = vmatpush.msra.mxu0 %v241
    %263 = vmatpush.msra.mxu0 %v240
    %264 = vmatpush.msra.mxu0 %v239
    %265 = vmatpush.msra.mxu0 %v238
    %266 = vmatpush.msra.mxu0 %v237
    %267 = vmatpush.msra.mxu0 %v236
    %268 = vmatmul.f32.gmra.mxu0 %v233
    %v269 = vpop.f32.mrf.mxu0
    %v270 = vadd.f32 0.0, %v269
    %271 = vdwg.mxu0
    %272 = vmatpush.msra.mxu0 %v185
    %273 = vmatpush.msra.mxu0 %v184
    %274 = vmatpush.msra.mxu0 %v183
    %275 = vmatpush.msra.mxu0 %v182
    %276 = vmatpush.msra.mxu0 %v181
    %277 = vmatpush.msra.mxu0 %v180
    %278 = vmatpush.msra.mxu0 %v179
    %279 = vmatpush.msra.mxu0 %v178
    %280 = vmatpush.msra.mxu0 %v177
    %281 = vmatpush.msra.mxu0 %v176
    %282 = vmatpush.msra.mxu0 %v175
    %283 = vmatpush.msra.mxu0 %v174
    %284 = vmatpush.msra.mxu0 %v173
    %285 = vmatpush.msra.mxu0 %v172
    %286 = vmatpush.msra.mxu0 %v171
    %287 = vmatpush.msra.mxu0 %v170
    %288 = vmatmul.f32.gmra.mxu0 %v168
    %v289 = vpop.f32.mrf.mxu0
    %v290 = vadd.f32 %v270, %v289
    %291 = vdwg.mxu0
    %292 = vset.pattern.permute.xlu0 2
    %293 = vperm.xlu0 %292, %v85
    %v294 = vpop.permute.xlu0 %293
    %vm295 = vcmp.eq.s32.totalorder %v119, %v294
    %vm296 = vcmp.eq.s32.totalorder %v120, %v294
    %v297 = vsel %vm295, 1, 0
    %v298 = vsel %vm296, 1, 0
    %v299 = vcvt.s32.f32 %v297
    %v300 = vcvt.s32.f32 %v298
    %301 = vmatpush.msra.mxu0 %v101
    %302 = vmatpush.msra.mxu0 %v100
    %303 = vmatpush.msra.mxu0 %v99
    %304 = vmatpush.msra.mxu0 %v98
    %305 = vmatpush.msra.mxu0 %v97
    %306 = vmatpush.msra.mxu0 %v96
    %307 = vmatpush.msra.mxu0 %v95
    %308 = vmatpush.msra.mxu0 %v94
    %309 = vmatpush.msra.mxu0 %v93
    %310 = vmatpush.msra.mxu0 %v92
    %311 = vmatpush.msra.mxu0 %v91
    %312 = vmatpush.msra.mxu0 %v90
    %313 = vmatpush.msra.mxu0 %v89
    %314 = vmatpush.msra.mxu0 %v88
    %315 = vmatpush.msra.mxu0 %v87
    %316 = vmatpush.msra.mxu0 %v86
    %317 = vmatmul.f32.gmra.mxu0 %v299
    %v318 = vpop.f32.mrf.mxu0
    %v319 = vadd.f32 0.0, %v318
    %320 = vdwg.mxu0
    %321 = vmatpush.msra.mxu0 %v117
    %322 = vmatpush.msra.mxu0 %v116
    %323 = vmatpush.msra.mxu0 %v115
    %324 = vmatpush.msra.mxu0 %v114
    %325 = vmatpush.msra.mxu0 %v113
    %326 = vmatpush.msra.mxu0 %v112
    %327 = vmatpush.msra.mxu0 %v111
    %328 = vmatpush.msra.mxu0 %v110
    %329 = vmatpush.msra.mxu0 %v109
    %330 = vmatpush.msra.mxu0 %v108
    %331 = vmatpush.msra.mxu0 %v107
    %332 = vmatpush.msra.mxu0 %v106
    %333 = vmatpush.msra.mxu0 %v105
    %334 = vmatpush.msra.mxu0 %v104
    %335 = vmatpush.msra.mxu0 %v103
    %336 = vmatpush.msra.mxu0 %v102
    %337 = vmatmul.f32.gmra.mxu0 %v300
    %v338 = vpop.f32.mrf.mxu0
    %v339 = vadd.f32 %v319, %v338
    %340 = vdwg.mxu0
    %s341 = scalar_lea.vmem [#allocation7], 256
    %v342 = vld [vmem:[%s341] sm:$0xff]
    %v343 = vld [vmem:[%s341 + $0x8] sm:$0xff]
    %v344 = vld [vmem:[%s341 + $0x10] sm:$0xff]
    %v345 = vld [vmem:[%s341 + $0x18] sm:$0xff]
    %v346 = vld [vmem:[%s341 + $0x20] sm:$0xff]
    %v347 = vld [vmem:[%s341 + $0x28] sm:$0xff]
    %v348 = vld [vmem:[%s341 + $0x30] sm:$0xff]
    %v349 = vld [vmem:[%s341 + $0x38] sm:$0xff]
    %v350 = vld [vmem:[%s341 + $0x40] sm:$0xff]
    %v351 = vld [vmem:[%s341 + $0x48] sm:$0xff]
    %v352 = vld [vmem:[%s341 + $0x50] sm:$0xff]
    %v353 = vld [vmem:[%s341 + $0x58] sm:$0xff]
    %v354 = vld [vmem:[%s341 + $0x60] sm:$0xff]
    %v355 = vld [vmem:[%s341 + $0x68] sm:$0xff]
    %v356 = vld [vmem:[%s341 + $0x70] sm:$0xff]
    %v357 = vld [vmem:[%s341 + $0x78] sm:$0xff]
    %358 = vmatpush.msra.mxu0 %v357
    %359 = vmatpush.msra.mxu0 %v356
    %360 = vmatpush.msra.mxu0 %v355
    %361 = vmatpush.msra.mxu0 %v354
    %362 = vmatpush.msra.mxu0 %v353
    %363 = vmatpush.msra.mxu0 %v352
    %364 = vmatpush.msra.mxu0 %v351
    %365 = vmatpush.msra.mxu0 %v350
    %366 = vmatpush.msra.mxu0 %v349
    %367 = vmatpush.msra.mxu0 %v348
    %368 = vmatpush.msra.mxu0 %v347
    %369 = vmatpush.msra.mxu0 %v346
    %370 = vmatpush.msra.mxu0 %v345
    %371 = vmatpush.msra.mxu0 %v344
    %372 = vmatpush.msra.mxu0 %v343
    %373 = vmatpush.msra.mxu0 %v342
    %374 = vmatmul.f32.gmra.mxu0 %v339
    %v375 = vpop.f32.mrf.mxu0
    %v376 = vadd.f32 0.0, %v375
    %377 = vdwg.mxu0
    %v378 = vadd.f32 %v290, %v376
    %379 = vset.pattern.permute.xlu0 3
    %380 = vperm.xlu0 %379, %v85
    %v381 = vpop.permute.xlu0 %380
    %vm382 = vcmp.eq.s32.totalorder %v119, %v381
    %vm383 = vcmp.eq.s32.totalorder %v120, %v381
    %v384 = vsel %vm382, 1, 0
    %v385 = vsel %vm383, 1, 0
    %v386 = vcvt.s32.f32 %v384
    %v387 = vcvt.s32.f32 %v385
    %388 = vmatpush.msra.mxu0 %v101
    %389 = vmatpush.msra.mxu0 %v100
    %390 = vmatpush.msra.mxu0 %v99
    %391 = vmatpush.msra.mxu0 %v98
    %392 = vmatpush.msra.mxu0 %v97
    %393 = vmatpush.msra.mxu0 %v96
    %394 = vmatpush.msra.mxu0 %v95
    %395 = vmatpush.msra.mxu0 %v94
    %396 = vmatpush.msra.mxu0 %v93
    %397 = vmatpush.msra.mxu0 %v92
    %398 = vmatpush.msra.mxu0 %v91
    %399 = vmatpush.msra.mxu0 %v90
    %400 = vmatpush.msra.mxu0 %v89
    %401 = vmatpush.msra.mxu0 %v88
    %402 = vmatpush.msra.mxu0 %v87
    %403 = vmatpush.msra.mxu0 %v86
    %404 = vmatmul.f32.gmra.mxu0 %v386
    %v405 = vpop.f32.mrf.mxu0
    %v406 = vadd.f32 0.0, %v405
    %407 = vdwg.mxu0
    %408 = vmatpush.msra.mxu0 %v117
    %409 = vmatpush.msra.mxu0 %v116
    %410 = vmatpush.msra.mxu0 %v115
    %411 = vmatpush.msra.mxu0 %v114
    %412 = vmatpush.msra.mxu0 %v113
    %413 = vmatpush.msra.mxu0 %v112
    %414 = vmatpush.msra.mxu0 %v111
    %415 = vmatpush.msra.mxu0 %v110
    %416 = vmatpush.msra.mxu0 %v109
    %417 = vmatpush.msra.mxu0 %v108
    %418 = vmatpush.msra.mxu0 %v107
    %419 = vmatpush.msra.mxu0 %v106
    %420 = vmatpush.msra.mxu0 %v105
    %421 = vmatpush.msra.mxu0 %v104
    %422 = vmatpush.msra.mxu0 %v103
    %423 = vmatpush.msra.mxu0 %v102
    %424 = vmatmul.f32.gmra.mxu0 %v387
    %v425 = vpop.f32.mrf.mxu0
    %v426 = vadd.f32 %v406, %v425
    %427 = vdwg.mxu0
    %s428 = scalar_lea.vmem [#allocation7], 384
    %v429 = vld [vmem:[%s428] sm:$0xff]
    %v430 = vld [vmem:[%s428 + $0x8] sm:$0xff]
    %v431 = vld [vmem:[%s428 + $0x10] sm:$0xff]
    %v432 = vld [vmem:[%s428 + $0x18] sm:$0xff]
    %v433 = vld [vmem:[%s428 + $0x20] sm:$0xff]
    %v434 = vld [vmem:[%s428 + $0x28] sm:$0xff]
    %v435 = vld [vmem:[%s428 + $0x30] sm:$0xff]
    %v436 = vld [vmem:[%s428 + $0x38] sm:$0xff]
    %v437 = vld [vmem:[%s428 + $0x40] sm:$0xff]
    %v438 = vld [vmem:[%s428 + $0x48] sm:$0xff]
    %v439 = vld [vmem:[%s428 + $0x50] sm:$0xff]
    %v440 = vld [vmem:[%s428 + $0x58] sm:$0xff]
    %v441 = vld [vmem:[%s428 + $0x60] sm:$0xff]
    %v442 = vld [vmem:[%s428 + $0x68] sm:$0xff]
    %v443 = vld [vmem:[%s428 + $0x70] sm:$0xff]
    %v444 = vld [vmem:[%s428 + $0x78] sm:$0xff]
    %445 = vmatpush.msra.mxu0 %v444
    %446 = vmatpush.msra.mxu0 %v443
    %447 = vmatpush.msra.mxu0 %v442
    %448 = vmatpush.msra.mxu0 %v441
    %449 = vmatpush.msra.mxu0 %v440
    %450 = vmatpush.msra.mxu0 %v439
    %451 = vmatpush.msra.mxu0 %v438
    %452 = vmatpush.msra.mxu0 %v437
    %453 = vmatpush.msra.mxu0 %v436
    %454 = vmatpush.msra.mxu0 %v435
    %455 = vmatpush.msra.mxu0 %v434
    %456 = vmatpush.msra.mxu0 %v433
    %457 = vmatpush.msra.mxu0 %v432
    %458 = vmatpush.msra.mxu0 %v431
    %459 = vmatpush.msra.mxu0 %v430
    %460 = vmatpush.msra.mxu0 %v429
    %461 = vmatmul.f32.gmra.mxu0 %v426
    %v462 = vpop.f32.mrf.mxu0
    %v463 = vadd.f32 0.0, %v462
    %464 = vdwg.mxu0
    %v465 = vadd.f32 %v378, %v463
    %466 = vset.pattern.permute.xlu0 4
    %467 = vperm.xlu0 %466, %v85
    %v468 = vpop.permute.xlu0 %467
    %vm469 = vcmp.eq.s32.totalorder %v119, %v468
    %vm470 = vcmp.eq.s32.totalorder %v120, %v468
    %v471 = vsel %vm469, 1, 0
    %v472 = vsel %vm470, 1, 0
    %v473 = vcvt.s32.f32 %v471
    %v474 = vcvt.s32.f32 %v472
    %475 = vmatpush.msra.mxu0 %v101
    %476 = vmatpush.msra.mxu0 %v100
    %477 = vmatpush.msra.mxu0 %v99
    %478 = vmatpush.msra.mxu0 %v98
    %479 = vmatpush.msra.mxu0 %v97
    %480 = vmatpush.msra.mxu0 %v96
    %481 = vmatpush.msra.mxu0 %v95
    %482 = vmatpush.msra.mxu0 %v94
    %483 = vmatpush.msra.mxu0 %v93
    %484 = vmatpush.msra.mxu0 %v92
    %485 = vmatpush.msra.mxu0 %v91
    %486 = vmatpush.msra.mxu0 %v90
    %487 = vmatpush.msra.mxu0 %v89
    %488 = vmatpush.msra.mxu0 %v88
    %489 = vmatpush.msra.mxu0 %v87
    %490 = vmatpush.msra.mxu0 %v86
    %491 = vmatmul.f32.gmra.mxu0 %v473
    %v492 = vpop.f32.mrf.mxu0
    %v493 = vadd.f32 0.0, %v492
    %494 = vdwg.mxu0
    %495 = vmatpush.msra.mxu0 %v117
    %496 = vmatpush.msra.mxu0 %v116
    %497 = vmatpush.msra.mxu0 %v115
    %498 = vmatpush.msra.mxu0 %v114
    %499 = vmatpush.msra.mxu0 %v113
    %500 = vmatpush.msra.mxu0 %v112
    %501 = vmatpush.msra.mxu0 %v111
    %502 = vmatpush.msra.mxu0 %v110
    %503 = vmatpush.msra.mxu0 %v109
    %504 = vmatpush.msra.mxu0 %v108
    %505 = vmatpush.msra.mxu0 %v107
    %506 = vmatpush.msra.mxu0 %v106
    %507 = vmatpush.msra.mxu0 %v105
    %508 = vmatpush.msra.mxu0 %v104
    %509 = vmatpush.msra.mxu0 %v103
    %510 = vmatpush.msra.mxu0 %v102
    %511 = vmatmul.f32.gmra.mxu0 %v474
    %v512 = vpop.f32.mrf.mxu0
    %v513 = vadd.f32 %v493, %v512
    %514 = vdwg.mxu0
    %s515 = scalar_lea.vmem [#allocation7], 512
    %v516 = vld [vmem:[%s515] sm:$0xff]
    %v517 = vld [vmem:[%s515 + $0x8] sm:$0xff]
    %v518 = vld [vmem:[%s515 + $0x10] sm:$0xff]
    %v519 = vld [vmem:[%s515 + $0x18] sm:$0xff]
    %v520 = vld [vmem:[%s515 + $0x20] sm:$0xff]
    %v521 = vld [vmem:[%s515 + $0x28] sm:$0xff]
    %v522 = vld [vmem:[%s515 + $0x30] sm:$0xff]
    %v523 = vld [vmem:[%s515 + $0x38] sm:$0xff]
    %v524 = vld [vmem:[%s515 + $0x40] sm:$0xff]
    %v525 = vld [vmem:[%s515 + $0x48] sm:$0xff]
    %v526 = vld [vmem:[%s515 + $0x50] sm:$0xff]
    %v527 = vld [vmem:[%s515 + $0x58] sm:$0xff]
    %v528 = vld [vmem:[%s515 + $0x60] sm:$0xff]
    %v529 = vld [vmem:[%s515 + $0x68] sm:$0xff]
    %v530 = vld [vmem:[%s515 + $0x70] sm:$0xff]
    %v531 = vld [vmem:[%s515 + $0x78] sm:$0xff]
    %532 = vmatpush.msra.mxu0 %v531
    %533 = vmatpush.msra.mxu0 %v530
    %534 = vmatpush.msra.mxu0 %v529
    %535 = vmatpush.msra.mxu0 %v528
    %536 = vmatpush.msra.mxu0 %v527
    %537 = vmatpush.msra.mxu0 %v526
    %538 = vmatpush.msra.mxu0 %v525
    %539 = vmatpush.msra.mxu0 %v524
    %540 = vmatpush.msra.mxu0 %v523
    %541 = vmatpush.msra.mxu0 %v522
    %542 = vmatpush.msra.mxu0 %v521
    %543 = vmatpush.msra.mxu0 %v520
    %544 = vmatpush.msra.mxu0 %v519
    %545 = vmatpush.msra.mxu0 %v518
    %546 = vmatpush.msra.mxu0 %v517
    %547 = vmatpush.msra.mxu0 %v516
    %548 = vmatmul.f32.gmra.mxu0 %v513
    %v549 = vpop.f32.mrf.mxu0
    %v550 = vadd.f32 0.0, %v549
    %551 = vdwg.mxu0
    %v552 = vadd.f32 %v465, %v550
    %v553 = vld [vmem:[%s3] sm:$0x1]
    %v555 = vperm.slane %v553, 0
    %v557 = vadd.f32 %v552, %v555
    %v558 = vtanh.pop %v557
    %v559 = vld [vmem:[#allocation8] sm:$0xff]
    %v560 = vld [vmem:[#allocation8 + $0x8] sm:$0xff]
    %v561 = vld [vmem:[#allocation8 + $0x10] sm:$0xff]
    %v562 = vld [vmem:[#allocation8 + $0x18] sm:$0xff]
    %v563 = vld [vmem:[#allocation8 + $0x20] sm:$0xff]
    %v564 = vld [vmem:[#allocation8 + $0x28] sm:$0xff]
    %v565 = vld [vmem:[#allocation8 + $0x30] sm:$0xff]
    %v566 = vld [vmem:[#allocation8 + $0x38] sm:$0xff]
    %v567 = vld [vmem:[#allocation8 + $0x40] sm:$0xff]
    %v568 = vld [vmem:[#allocation8 + $0x48] sm:$0xff]
    %v569 = vld [vmem:[#allocation8 + $0x50] sm:$0xff]
    %v570 = vld [vmem:[#allocation8 + $0x58] sm:$0xff]
    %v571 = vld [vmem:[#allocation8 + $0x60] sm:$0xff]
    %v572 = vld [vmem:[#allocation8 + $0x68] sm:$0xff]
    %v573 = vld [vmem:[#allocation8 + $0x70] sm:$0xff]
    %v574 = vld [vmem:[#allocation8 + $0x78] sm:$0xff]
    %v575 = vld [vmem:[%s5] sm:$0x1]
    %v577 = vperm.slane %v575, 0
    %579 = vmatpush.msra.mxu0 %v574
    %580 = vmatpush.msra.mxu0 %v573
    %581 = vmatpush.msra.mxu0 %v572
    %582 = vmatpush.msra.mxu0 %v571
    %583 = vmatpush.msra.mxu0 %v570
    %584 = vmatpush.msra.mxu0 %v569
    %585 = vmatpush.msra.mxu0 %v568
    %586 = vmatpush.msra.mxu0 %v567
    %587 = vmatpush.msra.mxu0 %v566
    %588 = vmatpush.msra.mxu0 %v565
    %589 = vmatpush.msra.mxu0 %v564
    %590 = vmatpush.msra.mxu0 %v563
    %591 = vmatpush.msra.mxu0 %v562
    %592 = vmatpush.msra.mxu0 %v561
    %593 = vmatpush.msra.mxu0 %v560
    %594 = vmatpush.msra.mxu0 %v559
    %595 = vmatmul.f32.gmra.mxu0 %v558
    %v596 = vpop.f32.mrf.mxu0
    %v597 = vadd.f32 %v577, %v596
    %598 = vdwg.mxu0
    %599 = vmax.xlane.f32.xlu0 %v597
    %v600 = vpop.xlane.xlu0 %599
    %v601 = vsub.f32 %v597, %v600
    %v602 = vmul.f32 %v601, 1.442695
    %v603 = vpow.pop %v602
    %604 = vadd.xlane.f32.xlu0 %v603
    %v605 = vpop.xlane.xlu0 %604
    %v606 = vrcp.pop %v605
    %v607 = vmul.f32 %v605, %v606
    %v608 = vsub.f32 1.0, %v607
    %v609 = vmul.f32 %v606, %v608
    %v610 = vadd.f32 %v606, %v609
    %vm611 = vweird.f32 %v605
    %vm612 = vweird.f32 %v606
    %vm613 = vmor %vm611, %vm612
    %v614 = vsel %vm613, %v606, %v610
    %v615 = vand.u32 2147483647, %v605
    %vm616 = vcmp.eq.f32.partialorder %v615, 8.507059e+37
    %v617 = vand.u32 %v605, 2147483648
    %v618 = vor.u32 1.1754944e-38, %v617
    %v619 = vsel %vm616, %v618, %v614
    %v620 = vmul.f32 %v603, %v619
    %621 = vst [vmem:[#allocation10] sm:$0xff] %v620
    // Predicated region
    $region42: #{tpu_custom_call.1} parent=1 // pred_check
      _
    $region43: #{tpu_custom_call.1} parent=1 // pred_check_branch
      %623 = sbr.rel (0) target = $region45
    $region44: #{tpu_custom_call.1} parent=1 // pred_region
      %625 = vsyncadd [#allocation4], 0
      %s627 = sshll.u32 [#allocation10], 4
      %s628 = int_to_ptr.vmem [resolvable:$true] %s627
      %s629 = sshll.u32 %s6, 4
      %s630 = int_to_ptr.hbm [resolvable:$true] %s629
      %632 = dma.vmem_to_hbm [thread:$0]  %s628, 128, %s630, [#allocation4]
    $region45: #{tpu_custom_call.1} parent=1 // pred_fallthru
      _
    // Predicated region
    $region46: #{tpu_custom_call.1} parent=1 // pred_check
      _
    $region47: #{tpu_custom_call.1} parent=1 // pred_check_branch
      %634 = sbr.rel (0) target = $region49
    $region48: #{tpu_custom_call.1} parent=1 // pred_region
      %636 = dma.done [#allocation4], 128
    $region49: #{tpu_custom_call.1} parent=1 // pred_fallthru
      _
    %637 = vsyncpa [#allocation3], 1
    %638 = vsyncpa [#allocation6], 1
    %639 = vsyncpa [#allocation9], 1
    %640 = vsyncpa [#allocation4], 1

</llo_original>
